<compile_context>
chip_gen: v7x
topology: tpu7x:2x2x1
jax: 0.10.0
libtpu: 0.0.40
codegen_flags: <defaults>
</compile_context>

<pallas_src>
import functools

import jax
import jax.numpy as jnp
from jax.experimental import pallas as pl
from jax.experimental.pallas import tpu as pltpu


def _round_up(x: int, m: int) -> int:
    return (x + m - 1) // m * m


def _fwd_kernel(idx_ref, inv_ref, scale_ref, emb_ref, w1_ref, b1_ref,
                w2_ref, b2_ref, out_ref, *, bpt: int, seq: int):
    """Grid = (M tiles, vocab tiles). Fully parallel: every (i, j) tile does
    gather -> RMS-normalize -> Linear/ReLU -> Linear(vocab tile)."""
    tm = idx_ref.shape[0]
    vp = emb_ref.shape[0]

    # --- fused embedding gather: one-hot (tm, Vp) @ emb (Vp, Dp) on the MXU ------
    ids = idx_ref[...]                                                 # (tm, 1) i32
    tok_iota = jax.lax.broadcasted_iota(jnp.int32, (tm, vp), 1)
    one_hot = (ids == tok_iota).astype(jnp.float32)                    # (tm, Vp)
    x = jnp.dot(one_hot, emb_ref[...],
                preferred_element_type=jnp.float32)                    # (tm, Dp) f32

    # --- RMSNorm: per-row 1/ff_rms precomputed; expand (S, Dp) scale over batches -
    scale = scale_ref[...]                                             # (S, Dp)
    if bpt > 1:
        scale = jnp.concatenate([scale] * bpt, axis=0)                 # (tm, Dp)
    normed = x * inv_ref[...] * scale                                  # (tm, Dp) f32

    # --- MLP: bf16 MXU feeds, f32 accumulation -----------------------------------
    h = jnp.dot(normed.astype(jnp.bfloat16), w1_ref[...],
                preferred_element_type=jnp.float32) + b1_ref[...]      # (tm, Dp) f32
    h = jnp.maximum(h, 0.0).astype(jnp.bfloat16)
    logits = jnp.dot(h, w2_ref[...],
                     preferred_element_type=jnp.float32) + b2_ref[...] # (tm, tn) f32
    out_ref[...] = logits.astype(out_ref.dtype)                        # lane-dense store


def prepare_params(emb_table, rms_scale, w1, b1, w2, b2):
    """One-time prep: zero-pad feature/vocab dims to multiples of 128, pre-cast the
    matmul weights to bf16, and precompute per-token squared embedding norms so the
    per-batch RMS scalar never needs a pass over the (B, S, D) activations."""
    V, D = emb_table.shape
    Dp = _round_up(D, 128)
    Vp = _round_up(V, 128)
    pad_d = Dp - D
    pad_v = Vp - V
    emb_p = jnp.pad(emb_table, ((0, pad_v), (0, pad_d)))               # (Vp, Dp) f32
    scale_p = jnp.pad(rms_scale, ((0, 0), (0, pad_d)))                 # (ctx, Dp) f32
    tok_sq = jnp.sum(emb_p * emb_p, axis=1)                            # (Vp,)  f32
    w1_p = jnp.pad(w1, ((0, pad_d), (0, pad_d))).astype(jnp.bfloat16)  # (Dp, Dp)
    b1_p = jnp.pad(b1, ((0, 0), (0, pad_d)))                           # (1, Dp)
    w2_p = jnp.pad(w2, ((0, pad_d), (0, pad_v))).astype(jnp.bfloat16)  # (Dp, Vp)
    b2_p = jnp.pad(b2, ((0, 0), (0, pad_v)))                           # (1, Vp)
    return emb_p, scale_p, tok_sq, w1_p, b1_p, w2_p, b2_p


@functools.partial(jax.jit, static_argnames=("d_model", "vocab_size"))
def simple_model_rms_forward(idx, emb_p, scale_p, tok_sq, w1_p, b1_p, w2_p, b2_p,
                             *, d_model, vocab_size):
    """idx: (B, S) int32 token ids. Returns logits (B, S, vocab_size) float32."""
    B, S = idx.shape
    Dp = emb_p.shape[1]
    Vp = w2_p.shape[1]

    # Per-batch inverse RMS from precomputed per-token squared norms (tiny scalar
    # gather + reduce; no activation-sized HBM pass).  Faithful to the PyTorch
    # reference there is NO epsilon: an all-zero embedding slab -> inf, same as torch.
    ms = jnp.sum(jnp.take(tok_sq, idx, axis=0), axis=1) / jnp.float32(S * d_model)
    inv_rms = jax.lax.rsqrt(ms)                                        # (B,)

    # Fold batch*seq into the matmul M dimension; tiles contain whole batches so the
    # (S, Dp) scale expands cleanly and each batch's rows stay within one tile.
    M = B * S
    bpt = max(1, min(B, max(1, 1024 // S)))      # batches per M tile (~1024 rows)
    while (bpt * S) % 8 != 0 and bpt < B:        # keep tm sublane-aligned (else 1 tile)
        bpt += 1
    tm = bpt * S
    Bp = _round_up(B, bpt)
    Mp = Bp * S

    idx_rows = idx.reshape(M, 1).astype(jnp.int32)
    inv_rows = jnp.broadcast_to(inv_rms[:, None], (B, S)).reshape(M, 1)
    if Mp != M:
        pad = Mp - M
        idx_rows = jnp.pad(idx_rows, ((0, pad), (0, 0)))                       # token 0
        inv_rows = jnp.pad(inv_rows, ((0, pad), (0, 0)), constant_values=1.0)  # finite

    tn = next(t for t in (512, 256, 128) if Vp % t == 0)
    num_m = Mp // tm
    num_n = Vp // tn
    scale_s = scale_p[:S, :]                                            # (S, Dp)

    flops = 2 * Mp * num_n * Dp * (Vp + Dp) + 2 * Mp * Dp * Vp
    bytes_accessed = (4 * Mp + 4 * Mp                 # idx rows + inv rows
                      + 4 * S * Dp + 4 * Vp * Dp      # scale + embedding table
                      + 2 * Dp * Dp + 4 * Dp          # W1 (bf16) + b1
                      + 2 * Dp * Vp + 4 * Vp          # W2 (bf16) + b2
                      + 4 * Mp * Vp)                  # logits out
    cost = pl.CostEstimate(flops=flops, transcendentals=0,
                           bytes_accessed=bytes_accessed)

    kernel = functools.partial(_fwd_kernel, bpt=bpt, seq=S)
    out = pl.pallas_call(
        kernel,
        out_shape=jax.ShapeDtypeStruct((Mp, Vp), jnp.float32),
        grid_spec=pltpu.PrefetchScalarGridSpec(
            num_scalar_prefetch=0,
            grid=(num_m, num_n),
            in_specs=[
                pl.BlockSpec((tm, 1), lambda i, j: (i, 0)),     # token ids per row
                pl.BlockSpec((tm, 1), lambda i, j: (i, 0)),     # 1/ff_rms per row
                pl.BlockSpec((S, Dp), lambda i, j: (0, 0)),     # RMSNorm scale (S, Dp)
                pl.BlockSpec((Vp, Dp), lambda i, j: (0, 0)),    # embedding table
                pl.BlockSpec((Dp, Dp), lambda i, j: (0, 0)),    # W1 (bf16, in x out)
                pl.BlockSpec((1, Dp), lambda i, j: (0, 0)),     # b1
                pl.BlockSpec((Dp, tn), lambda i, j: (0, j)),    # W2 vocab tile (bf16)
                pl.BlockSpec((1, tn), lambda i, j: (0, j)),     # b2 vocab tile
            ],
            out_specs=pl.BlockSpec((tm, tn), lambda i, j: (i, j)),
        ),
        compiler_params=pltpu.CompilerParams(
            # No cross-iteration carry -> both axes parallel (v7x megacore can shard).
            # No vmem_limit override: working set is a few MiB, fits default on v5e-v7x.
            dimension_semantics=("parallel", "parallel"),
        ),
        cost_estimate=cost,
    )(idx_rows, inv_rows, scale_s, emb_p, w1_p, b1_p, w2_p, b2_p)

    # Padded rows / vocab columns are garbage by construction; slice them away here.
    return out[:M, :vocab_size].reshape(B, S, vocab_size)


def init_params(key, vocab_size, d_model, context_window):
    k_emb, k_w1, k_b1, k_w2, k_b2 = jax.random.split(key, 5)
    # nn.Embedding default init: N(0, 1)
    emb_table = jax.random.normal(k_emb, (vocab_size, d_model), jnp.float32)
    # RMSNorm scale: ones of shape (context_window, d_model)
    rms_scale = jnp.ones((context_window, d_model), jnp.float32)
    # nn.Linear default init: U(-1/sqrt(fan_in), 1/sqrt(fan_in)); stored as (in, out)
    lim1 = 1.0 / jnp.sqrt(d_model)
    w1 = jax.random.uniform(k_w1, (d_model, d_model), jnp.float32, -lim1, lim1)
    b1 = jax.random.uniform(k_b1, (1, d_model), jnp.float32, -lim1, lim1)
    w2 = jax.random.uniform(k_w2, (d_model, vocab_size), jnp.float32, -lim1, lim1)
    b2 = jax.random.uniform(k_b2, (1, vocab_size), jnp.float32, -lim1, lim1)
    return emb_table, rms_scale, w1, b1, w2, b2


if __name__ == "__main__":
    config = dict(vocab_size=64, d_model=32, context_window=8)
    B, S = 2, config["context_window"]
    D, V = config["d_model"], config["vocab_size"]

    key = jax.random.PRNGKey(0)
    k_params, k_idx = jax.random.split(key)
    raw_params = init_params(k_params, V, D, config["context_window"])
    params = prepare_params(*raw_params)
    idx = jax.random.randint(k_idx, (B, S), 0, V, dtype=jnp.int32)

    logits = simple_model_rms_forward(idx, *params, d_model=D, vocab_size=V)
    jax.block_until_ready(logits)
    assert logits.shape == (B, S, V)
    assert logits.dtype == jnp.float32

    # Pure-JAX reference of the module's math (embedding -> per-batch RMS -> MLP),
    # using the original unpadded f32 params; bf16 weight cast mirrored to match the
    # kernel's MXU feeds.
    emb_table, rms_scale, w1, b1, w2, b2 = raw_params
    xr = jnp.take(emb_table, idx, axis=0)                              # (B, S, D)
    inv = jax.lax.rsqrt(jnp.sum(xr * xr, axis=(1, 2), keepdims=True) / (S * D))
    normed = rms_scale[None, :S, :] * (xr * inv)
    h = jnp.maximum(
        jnp.dot(normed.astype(jnp.bfloat16), w1.astype(jnp.bfloat16),
                preferred_element_type=jnp.float32) + b1, 0.0)
    ref = jnp.dot(h.astype(jnp.bfloat16), w2.astype(jnp.bfloat16),
                  preferred_element_type=jnp.float32) + b2
    assert jnp.allclose(logits, ref, atol=2e-2, rtol=2e-2)

    # TODO(synk): cross-entropy loss branch (targets is not None) is left to the host/JAX side.
    print("KERNEL_OK")
</pallas_src>

<mosaic_0001>
module attributes {stable_mosaic.version = 11 : i64} {
  func.func @_fwd_kernel(%arg0: i32, %arg1: i32, %arg2: memref<16x1xi32, #tpu.memory_space<vmem>>, %arg3: memref<16x1xf32, #tpu.memory_space<vmem>>, %arg4: memref<8x128xf32, #tpu.memory_space<vmem>>, %arg5: memref<128x128xf32, #tpu.memory_space<vmem>>, %arg6: memref<128x128xbf16, #tpu.memory_space<vmem>>, %arg7: memref<1x128xf32, #tpu.memory_space<vmem>>, %arg8: memref<128x128xbf16, #tpu.memory_space<vmem>>, %arg9: memref<1x128xf32, #tpu.memory_space<vmem>>, %arg10: memref<16x128xf32, #tpu.memory_space<vmem>>) attributes {dimension_semantics = [#tpu.dimension_semantics<parallel>, #tpu.dimension_semantics<parallel>], iteration_bounds = array<i64: 1, 1>, scalar_prefetch = 0 : i64, scratch_operands = 0 : i64, tpu.core_type = #tpu.core_type<tc>, window_params = [{transform_indices = @transform_0, window_bounds = array<i64: 16, 1>}, {transform_indices = @transform_1, window_bounds = array<i64: 16, 1>}, {pipeline_mode = #tpu.pipeline_mode<synchronous>, transform_indices = @transform_2, window_bounds = array<i64: 8, 128>}, {pipeline_mode = #tpu.pipeline_mode<synchronous>, transform_indices = @transform_3, window_bounds = array<i64: 128, 128>}, {pipeline_mode = #tpu.pipeline_mode<synchronous>, transform_indices = @transform_4, window_bounds = array<i64: 128, 128>}, {pipeline_mode = #tpu.pipeline_mode<synchronous>, transform_indices = @transform_5, window_bounds = array<i64: 1, 128>}, {transform_indices = @transform_6, window_bounds = array<i64: 128, 128>}, {transform_indices = @transform_7, window_bounds = array<i64: 1, 128>}, {transform_indices = @transform_8, window_bounds = array<i64: 16, 128>}]} {
    %c0 = arith.constant 0 : index
    %c0_0 = arith.constant 0 : index
    %0 = vector.load %arg2[%c0, %c0_0] : memref<16x1xi32, #tpu.memory_space<vmem>>, vector<16x1xi32>
    %1 = tpu.iota {dimensions = array<i32: 1>} : vector<16x128xi32>
    %2 = vector.broadcast %0 : vector<16x1xi32> to vector<16x128xi32>
    %3 = arith.cmpi eq, %2, %1 : vector<16x128xi32>
    %4 = arith.extui %3 : vector<16x128xi1> to vector<16x128xi32>
    %5 = arith.sitofp %4 : vector<16x128xi32> to vector<16x128xf32>
    %c0_1 = arith.constant 0 : index
    %c0_2 = arith.constant 0 : index
    %6 = vector.load %arg5[%c0_1, %c0_2] : memref<128x128xf32, #tpu.memory_space<vmem>>, vector<128x128xf32>
    %cst = arith.constant dense<0.000000e+00> : vector<16x128xf32>
    %7 = tpu.matmul %5, %6, %cst {dimension_numbers = #tpu.dot_dimension_numbers<[1], [0], [0], [1], [0, 0, 1, 1], [], []>} : vector<16x128xf32>, vector<128x128xf32>, vector<16x128xf32> -> vector<16x128xf32>
    %c0_3 = arith.constant 0 : index
    %c0_4 = arith.constant 0 : index
    %8 = vector.load %arg4[%c0_3, %c0_4] : memref<8x128xf32, #tpu.memory_space<vmem>>, vector<8x128xf32>
    %9 = tpu.concatenate %8, %8 in 0 : vector<8x128xf32>, vector<8x128xf32> -> vector<16x128xf32>
    %c0_5 = arith.constant 0 : index
    %c0_6 = arith.constant 0 : index
    %10 = vector.load %arg3[%c0_5, %c0_6] : memref<16x1xf32, #tpu.memory_space<vmem>>, vector<16x1xf32>
    %11 = vector.broadcast %10 : vector<16x1xf32> to vector<16x128xf32>
    %12 = arith.mulf %7, %11 : vector<16x128xf32>
    %13 = arith.mulf %12, %9 : vector<16x128xf32>
    %14 = arith.truncf %13 : vector<16x128xf32> to vector<16x128xbf16>
    %c0_7 = arith.constant 0 : index
    %c0_8 = arith.constant 0 : index
    %15 = vector.load %arg6[%c0_7, %c0_8] : memref<128x128xbf16, #tpu.memory_space<vmem>>, vector<128x128xbf16>
    %cst_9 = arith.constant dense<0.000000e+00> : vector<16x128xf32>
    %16 = tpu.matmul %14, %15, %cst_9 {dimension_numbers = #tpu.dot_dimension_numbers<[1], [0], [0], [1], [0, 0, 1, 1], [], []>} : vector<16x128xbf16>, vector<128x128xbf16>, vector<16x128xf32> -> vector<16x128xf32>
    %c0_10 = arith.constant 0 : index
    %c0_11 = arith.constant 0 : index
    %17 = vector.load %arg7[%c0_10, %c0_11] : memref<1x128xf32, #tpu.memory_space<vmem>>, vector<1x128xf32>
    %18 = vector.broadcast %17 : vector<1x128xf32> to vector<16x128xf32>
    %19 = arith.addf %16, %18 : vector<16x128xf32>
    %cst_12 = arith.constant 0.000000e+00 : f32
    %20 = vector.broadcast %cst_12 : f32 to vector<16x128xf32>
    %21 = arith.maximumf %19, %20 : vector<16x128xf32>
    %22 = arith.truncf %21 : vector<16x128xf32> to vector<16x128xbf16>
    %c0_13 = arith.constant 0 : index
    %c0_14 = arith.constant 0 : index
    %23 = vector.load %arg8[%c0_13, %c0_14] : memref<128x128xbf16, #tpu.memory_space<vmem>>, vector<128x128xbf16>
    %cst_15 = arith.constant dense<0.000000e+00> : vector<16x128xf32>
    %24 = tpu.matmul %22, %23, %cst_15 {dimension_numbers = #tpu.dot_dimension_numbers<[1], [0], [0], [1], [0, 0, 1, 1], [], []>} : vector<16x128xbf16>, vector<128x128xbf16>, vector<16x128xf32> -> vector<16x128xf32>
    %c0_16 = arith.constant 0 : index
    %c0_17 = arith.constant 0 : index
    %25 = vector.load %arg9[%c0_16, %c0_17] : memref<1x128xf32, #tpu.memory_space<vmem>>, vector<1x128xf32>
    %26 = vector.broadcast %25 : vector<1x128xf32> to vector<16x128xf32>
    %27 = arith.addf %24, %26 : vector<16x128xf32>
    %c0_18 = arith.constant 0 : index
    %c0_19 = arith.constant 0 : index
    %28 = vector.load %arg10[%c0_18, %c0_19] : memref<16x128xf32, #tpu.memory_space<vmem>>, vector<16x128xf32>
    tpu.vector_store %arg10[%c0_18, %c0_19], %27 {strides = array<i32>} : memref<16x128xf32, #tpu.memory_space<vmem>>, vector<16x128xf32>,
    return
  }
  func.func @transform_0(%arg0: i32, %arg1: i32) -> (i32, i32) {
    %c0_i32 = arith.constant 0 : i32
    %c0_i32_0 = arith.constant 0 : i32
    return %arg0, %c0_i32 : i32, i32
  }
  func.func @transform_1(%arg0: i32, %arg1: i32) -> (i32, i32) {
    %c0_i32 = arith.constant 0 : i32
    %c0_i32_0 = arith.constant 0 : i32
    return %arg0, %c0_i32 : i32, i32
  }
  func.func @transform_2(%arg0: i32, %arg1: i32) -> (i32, i32) {
    %c0_i32 = arith.constant 0 : i32
    %c0_i32_0 = arith.constant 0 : i32
    %c0_i32_1 = arith.constant 0 : i32
    return %c0_i32, %c0_i32_0 : i32, i32
  }
  func.func @transform_3(%arg0: i32, %arg1: i32) -> (i32, i32) {
    %c0_i32 = arith.constant 0 : i32
    %c0_i32_0 = arith.constant 0 : i32
    %c0_i32_1 = arith.constant 0 : i32
    return %c0_i32, %c0_i32_0 : i32, i32
  }
  func.func @transform_4(%arg0: i32, %arg1: i32) -> (i32, i32) {
    %c0_i32 = arith.constant 0 : i32
    %c0_i32_0 = arith.constant 0 : i32
    %c0_i32_1 = arith.constant 0 : i32
    return %c0_i32, %c0_i32_0 : i32, i32
  }
  func.func @transform_5(%arg0: i32, %arg1: i32) -> (i32, i32) {
    %c0_i32 = arith.constant 0 : i32
    %c0_i32_0 = arith.constant 0 : i32
    %c0_i32_1 = arith.constant 0 : i32
    return %c0_i32, %c0_i32_0 : i32, i32
  }
  func.func @transform_6(%arg0: i32, %arg1: i32) -> (i32, i32) {
    %c0_i32 = arith.constant 0 : i32
    %c0_i32_0 = arith.constant 0 : i32
    return %c0_i32, %arg1 : i32, i32
  }
  func.func @transform_7(%arg0: i32, %arg1: i32) -> (i32, i32) {
    %c0_i32 = arith.constant 0 : i32
    %c0_i32_0 = arith.constant 0 : i32
    return %c0_i32, %arg1 : i32, i32
  }
  func.func @transform_8(%arg0: i32, %arg1: i32) -> (i32, i32) {
    %c0_i32 = arith.constant 0 : i32
    return %arg0, %arg1 : i32, i32
  }
}

</mosaic_0001>

<llo_original>
// kernel: simple_model_rms_forward.1
$region0: #{simple_model_rms_forward.1}
  #allocation0 [shape = 'u32[]', space=smem, size = 0x4, offset = 0x4, fixed_abs, tag = 'smem constant byte address 0x4 - core index']
  #allocation1 [shape = 'u32[144,128]{1,0:T(1,128)}', space=vmem, size = 0x12000, scoped, tag = 'internal scratch']
  %s0 = inlined_call_operand.vmem [shape: s32[16,1], index: 0, kind: input, shape index: {}]
  %s1 = inlined_call_operand.vmem [shape: f32[16,1], index: 1, kind: input, shape index: {}]
  %s2 = inlined_call_operand.vmem [shape: f32[8,128], index: 2, kind: input, shape index: {}]
  %s3 = inlined_call_operand.vmem [shape: f32[128,128], index: 3, kind: input, shape index: {}]
  %s4 = inlined_call_operand.vmem [shape: bf16[128,128], index: 4, kind: input, shape index: {}]
  %s5 = inlined_call_operand.vmem [shape: f32[1,128], index: 5, kind: input, shape index: {}]
  %s6 = inlined_call_operand.vmem [shape: bf16[128,128], index: 6, kind: input, shape index: {}]
  %s7 = inlined_call_operand.vmem [shape: f32[1,128], index: 7, kind: input, shape index: {}]
  %s8 = inlined_call_operand.vmem [shape: f32[16,128], index: 8, kind: output, shape index: {}]
  %s9 = sld [smem:[#allocation0]]
  $region42: #{simple_model_rms_forward.1} parent=0
    _
  %s11 = ssub.s32 1, %s9
  %s12 = scalar_select 0, %s11, %s9
  // Predicated region
  $region2: #{simple_model_rms_forward.1} parent=0 // pred_check
    _
  $region3: #{simple_model_rms_forward.1} parent=0 // pred_check_branch
    %14 = sbr.rel (0) target = $region5
  $region4: #{simple_model_rms_forward.1} parent=0 // pred_region
    _
  $region5: #{simple_model_rms_forward.1} parent=0 // pred_fallthru
    _
  // Predicated region
  $region6: #{simple_model_rms_forward.1} parent=0 // pred_check
    _
  $region7: #{simple_model_rms_forward.1} parent=0 // pred_check_branch
    %16 = sbr.rel (0) target = $region9
  $region8: #{simple_model_rms_forward.1} parent=0 // pred_region
    _
  $region9: #{simple_model_rms_forward.1} parent=0 // pred_fallthru
    _
  // Predicated region
  $region10: #{simple_model_rms_forward.1} parent=0 // pred_check
    _
  $region11: #{simple_model_rms_forward.1} parent=0 // pred_check_branch
    %18 = sbr.rel (0) target = $region13
  $region12: #{simple_model_rms_forward.1} parent=0 // pred_region
    _
  $region13: #{simple_model_rms_forward.1} parent=0 // pred_fallthru
    _
  // Predicated region
  $region14: #{simple_model_rms_forward.1} parent=0 // pred_check
    _
  $region15: #{simple_model_rms_forward.1} parent=0 // pred_check_branch
    %20 = sbr.rel (0) target = $region17
  $region16: #{simple_model_rms_forward.1} parent=0 // pred_region
    _
  $region17: #{simple_model_rms_forward.1} parent=0 // pred_fallthru
    _
  // Predicated region
  $region18: #{simple_model_rms_forward.1} parent=0 // pred_check
    _
  $region19: #{simple_model_rms_forward.1} parent=0 // pred_check_branch
    %22 = sbr.rel (0) target = $region21
  $region20: #{simple_model_rms_forward.1} parent=0 // pred_region
    _
  $region21: #{simple_model_rms_forward.1} parent=0 // pred_fallthru
    _
  // Predicated region
  $region22: #{simple_model_rms_forward.1} parent=0 // pred_check
    _
  $region23: #{simple_model_rms_forward.1} parent=0 // pred_check_branch
    %24 = sbr.rel (0) target = $region25
  $region24: #{simple_model_rms_forward.1} parent=0 // pred_region
    _
  $region25: #{simple_model_rms_forward.1} parent=0 // pred_fallthru
    _
  // Predicated region
  $region26: #{simple_model_rms_forward.1} parent=0 // pred_check
    _
  $region27: #{simple_model_rms_forward.1} parent=0 // pred_check_branch
    %26 = sbr.rel (0) target = $region29
  $region28: #{simple_model_rms_forward.1} parent=0 // pred_region
    _
  $region29: #{simple_model_rms_forward.1} parent=0 // pred_fallthru
    _
  // Predicated region
  $region30: #{simple_model_rms_forward.1} parent=0 // pred_check
    _
  $region31: #{simple_model_rms_forward.1} parent=0 // pred_check_branch
    %28 = sbr.rel (0) target = $region33
  $region32: #{simple_model_rms_forward.1} parent=0 // pred_region
    _
  $region33: #{simple_model_rms_forward.1} parent=0 // pred_fallthru
    _
  %v30 = vld [vmem:[%s0] sm:$0xff]
  %v31 = vld [vmem:[%s0 + $0x8] sm:$0xff]
  %v32 = vlaneseq
  %v33 = vand.u32 %v32, 127
  %34 = vset.pattern.permute.xlu0 0
  %35 = vperm.xlu0 %34, %v30
  %v36 = vpop.permute.xlu0 %35
  %37 = vset.pattern.permute.xlu0 0
  %38 = vperm.xlu0 %37, %v31
  %v39 = vpop.permute.xlu0 %38
  %vm40 = vcmp.eq.s32.totalorder %v36, %v33
  %vm41 = vcmp.eq.s32.totalorder %v39, %v33
  %v42 = vsel %vm40, 1, 0
  %v43 = vsel %vm41, 1, 0
  %v44 = vcvt.s32.f32 %v42
  %v45 = vcvt.s32.f32 %v43
  %v46 = vld [vmem:[%s3] sm:$0xff]
  %v47 = vld [vmem:[%s3 + $0x8] sm:$0xff]
  %v48 = vld [vmem:[%s3 + $0x10] sm:$0xff]
  %v49 = vld [vmem:[%s3 + $0x18] sm:$0xff]
  %v50 = vld [vmem:[%s3 + $0x20] sm:$0xff]
  %v51 = vld [vmem:[%s3 + $0x28] sm:$0xff]
  %v52 = vld [vmem:[%s3 + $0x30] sm:$0xff]
  %v53 = vld [vmem:[%s3 + $0x38] sm:$0xff]
  %v54 = vld [vmem:[%s3 + $0x40] sm:$0xff]
  %v55 = vld [vmem:[%s3 + $0x48] sm:$0xff]
  %v56 = vld [vmem:[%s3 + $0x50] sm:$0xff]
  %v57 = vld [vmem:[%s3 + $0x58] sm:$0xff]
  %v58 = vld [vmem:[%s3 + $0x60] sm:$0xff]
  %v59 = vld [vmem:[%s3 + $0x68] sm:$0xff]
  %v60 = vld [vmem:[%s3 + $0x70] sm:$0xff]
  %v61 = vld [vmem:[%s3 + $0x78] sm:$0xff]
  %62 = vmatprep.subr.mxu0 0.0
  %63 = vmatpush1.msra.mxu0 %v46
  %64 = vmatprep.subr.mxu0 0.0
  %65 = vmatpush1.msra.mxu0 %v47
  %66 = vmatprep.subr.mxu0 0.0
  %67 = vmatpush1.msra.mxu0 %v48
  %68 = vmatprep.subr.mxu0 0.0
  %69 = vmatpush1.msra.mxu0 %v49
  %70 = vmatprep.subr.mxu0 0.0
  %71 = vmatpush1.msra.mxu0 %v50
  %72 = vmatprep.subr.mxu0 0.0
  %73 = vmatpush1.msra.mxu0 %v51
  %74 = vmatprep.subr.mxu0 0.0
  %75 = vmatpush1.msra.mxu0 %v52
  %76 = vmatprep.subr.mxu0 0.0
  %77 = vmatpush1.msra.mxu0 %v53
  %78 = vmatprep.subr.mxu0 0.0
  %79 = vmatpush1.msra.mxu0 %v54
  %80 = vmatprep.subr.mxu0 0.0
  %81 = vmatpush1.msra.mxu0 %v55
  %82 = vmatprep.subr.mxu0 0.0
  %83 = vmatpush1.msra.mxu0 %v56
  %84 = vmatprep.subr.mxu0 0.0
  %85 = vmatpush1.msra.mxu0 %v57
  %86 = vmatprep.subr.mxu0 0.0
  %87 = vmatpush1.msra.mxu0 %v58
  %88 = vmatprep.subr.mxu0 0.0
  %89 = vmatpush1.msra.mxu0 %v59
  %90 = vmatprep.subr.mxu0 0.0
  %91 = vmatpush1.msra.mxu0 %v60
  %92 = vmatprep.subr.mxu0 0.0
  %93 = vmatpush1.msra.mxu0 %v61
  %94 = vmatprep.subr.mxu0 0.0
  %95 = vmatpush1.msra.mxu0 0.0
  %96 = vmatprep.subr.mxu0 0.0
  %97 = vmatpush1.msra.mxu0 0.0
  %98 = vmatprep.subr.mxu0 0.0
  %99 = vmatpush1.msra.mxu0 0.0
  %100 = vmatprep.subr.mxu0 0.0
  %101 = vmatpush1.msra.mxu0 0.0
  %102 = vmatprep.subr.mxu0 0.0
  %103 = vmatpush1.msra.mxu0 0.0
  %104 = vmatprep.subr.mxu0 0.0
  %105 = vmatpush1.msra.mxu0 0.0
  %106 = vmatprep.subr.mxu0 0.0
  %107 = vmatpush1.msra.mxu0 0.0
  %108 = vmatprep.subr.mxu0 0.0
  %109 = vmatpush1.msra.mxu0 0.0
  %110 = vmatprep.subr.mxu0 0.0
  %111 = vmatpush1.msra.mxu0 0.0
  %112 = vmatprep.subr.mxu0 0.0
  %113 = vmatpush1.msra.mxu0 0.0
  %114 = vmatprep.subr.mxu0 0.0
  %115 = vmatpush1.msra.mxu0 0.0
  %116 = vmatprep.subr.mxu0 0.0
  %117 = vmatpush1.msra.mxu0 0.0
  %118 = vmatprep.subr.mxu0 0.0
  %119 = vmatpush1.msra.mxu0 0.0
  %120 = vmatprep.subr.mxu0 0.0
  %121 = vmatpush1.msra.mxu0 0.0
  %122 = vmatprep.subr.mxu0 0.0
  %123 = vmatpush1.msra.mxu0 0.0
  %124 = vmatprep.subr.mxu0 0.0
  %125 = vmatpush1.msra.mxu0 0.0
  %126 = vmatprep.mubr.f32.mxu0 0.0
  %127 = vmatmul.mubr.f32.gmra.mrb[0].mxu0 %v44
  %v128 = vpop.f32.mrb[0].mxu0
  %v129 = vadd.f32 0.0, %v128
  %v130 = vpop.f32.mrb[0].mxu0
  %131 = vmatprep.mubr.f32.mxu0 0.0
  %132 = vmatmul.mubr.f32.gmra.mrb[0].mxu0 %v45
  %v133 = vpop.f32.mrb[0].mxu0
  %v134 = vadd.f32 0.0, %v133
  %v135 = vpop.f32.mrb[0].mxu0
  %136 = vdwg.mxu0
  %v137 = vld [vmem:[%s2] sm:$0xff]
  %v138 = vld [vmem:[%s1] sm:$0xff]
  %v139 = vld [vmem:[%s1 + $0x8] sm:$0xff]
  %141 = vset.pattern.permute.xlu0 0
  %142 = vperm.xlu0 %141, %v138
  %v143 = vpop.permute.xlu0 %142
  %146 = vset.pattern.permute.xlu0 0
  %147 = vperm.xlu0 %146, %v139
  %v148 = vpop.permute.xlu0 %147
  %v150 = vmul.f32 %v129, %v143
  %v151 = vmul.f32 %v134, %v148
  %v152 = vmul.f32 %v150, %v137
  %v153 = vmul.f32 %v151, %v137
  %v154 = vpack.c.bf16 %v153, %v152
  %v155 = vld [vmem:[%s4] sm:$0xf]
  %v156 = vld [vmem:[%s4 + $0x4] sm:$0xf]
  %v157 = vld [vmem:[%s4 + $0x8] sm:$0xf]
  %v158 = vld [vmem:[%s4 + $0xc] sm:$0xf]
  %v159 = vld [vmem:[%s4 + $0x10] sm:$0xf]
  %v160 = vld [vmem:[%s4 + $0x14] sm:$0xf]
  %v161 = vld [vmem:[%s4 + $0x18] sm:$0xf]
  %v162 = vld [vmem:[%s4 + $0x1c] sm:$0xf]
  %v163 = vld [vmem:[%s4 + $0x20] sm:$0xf]
  %v164 = vld [vmem:[%s4 + $0x24] sm:$0xf]
  %v165 = vld [vmem:[%s4 + $0x28] sm:$0xf]
  %v166 = vld [vmem:[%s4 + $0x2c] sm:$0xf]
  %v167 = vld [vmem:[%s4 + $0x30] sm:$0xf]
  %v168 = vld [vmem:[%s4 + $0x34] sm:$0xf]
  %v169 = vld [vmem:[%s4 + $0x38] sm:$0xf]
  %v170 = vld [vmem:[%s4 + $0x3c] sm:$0xf]
  %v171 = vld [vmem:[%s5] sm:$0x1]
  %v173 = vlaneseq
  %v174 = vshrl.u32 %v173, 7
  %v175 = vsub.s32 0, %v174
  %v176 = vrot.slane %v171, %v175
  %v194 = vunpack.c.l.b16 %v155
  %v195 = vunpack.c.l.b16 %v156
  %v196 = vunpack.c.l.b16 %v157
  %v197 = vunpack.c.l.b16 %v158
  %v198 = vunpack.c.l.b16 %v159
  %v199 = vunpack.c.l.b16 %v160
  %v200 = vunpack.c.l.b16 %v161
  %v201 = vunpack.c.l.b16 %v162
  %v202 = vunpack.c.l.b16 %v163
  %v203 = vunpack.c.l.b16 %v164
  %v204 = vunpack.c.l.b16 %v165
  %v205 = vunpack.c.l.b16 %v166
  %v206 = vunpack.c.l.b16 %v167
  %v207 = vunpack.c.l.b16 %v168
  %v208 = vunpack.c.l.b16 %v169
  %v209 = vunpack.c.l.b16 %v170
  %v210 = vpack.c.b16 %v195, %v194
  %v211 = vpack.c.b16 %v197, %v196
  %v212 = vpack.c.b16 %v199, %v198
  %v213 = vpack.c.b16 %v201, %v200
  %v214 = vpack.c.b16 %v203, %v202
  %v215 = vpack.c.b16 %v205, %v204
  %v216 = vpack.c.b16 %v207, %v206
  %v217 = vpack.c.b16 %v209, %v208
  %226 = vmatprep.subr.bf16.mxu0 0
  %227 = vmatpush1.bf16.msra.mxu0 %v210
  %228 = vmatprep.subr.bf16.mxu0 0
  %229 = vmatpush1.bf16.msra.mxu0 %v211
  %230 = vmatprep.subr.bf16.mxu0 0
  %231 = vmatpush1.bf16.msra.mxu0 %v212
  %232 = vmatprep.subr.bf16.mxu0 0
  %233 = vmatpush1.bf16.msra.mxu0 %v213
  %234 = vmatprep.subr.bf16.mxu0 0
  %235 = vmatpush1.bf16.msra.mxu0 %v214
  %236 = vmatprep.subr.bf16.mxu0 0
  %237 = vmatpush1.bf16.msra.mxu0 %v215
  %238 = vmatprep.subr.bf16.mxu0 0
  %239 = vmatpush1.bf16.msra.mxu0 %v216
  %240 = vmatprep.subr.bf16.mxu0 0
  %241 = vmatpush1.bf16.msra.mxu0 %v217
  %242 = vmatprep.subr.bf16.mxu0 0
  %243 = vmatpush1.bf16.msra.mxu0 0
  %244 = vmatprep.subr.bf16.mxu0 0
  %245 = vmatpush1.bf16.msra.mxu0 0
  %246 = vmatprep.subr.bf16.mxu0 0
  %247 = vmatpush1.bf16.msra.mxu0 0
  %248 = vmatprep.subr.bf16.mxu0 0
  %249 = vmatpush1.bf16.msra.mxu0 0
  %250 = vmatprep.subr.bf16.mxu0 0
  %251 = vmatpush1.bf16.msra.mxu0 0
  %252 = vmatprep.subr.bf16.mxu0 0
  %253 = vmatpush1.bf16.msra.mxu0 0
  %254 = vmatprep.subr.bf16.mxu0 0
  %255 = vmatpush1.bf16.msra.mxu0 0
  %256 = vmatprep.subr.bf16.mxu0 0
  %257 = vmatpush1.bf16.msra.mxu0 0
  %258 = vmatprep.mubr.bf16.mxu0 0
  %259 = vmatmul.mubr.bf16.gmra.mrb[0].mxu0 %v154
  %v260 = vpop.f32.mrb[0].mxu0
  %v261 = vadd.f32 %v176, %v260
  %v262 = vpop.f32.mrb[0].mxu0
  %v263 = vpop.f32.mrb[0].mxu0
  %v264 = vadd.f32 %v176, %v263
  %v265 = vpop.f32.mrb[0].mxu0
  %266 = vdwg.mxu0
  %v267 = vmax.f32 %v261, 0.0
  %v268 = vmax.f32 %v264, 0.0
  %v269 = vpack.c.bf16 %v268, %v267
  %v270 = vld [vmem:[%s6] sm:$0xf]
  %v271 = vld [vmem:[%s6 + $0x4] sm:$0xf]
  %v272 = vld [vmem:[%s6 + $0x8] sm:$0xf]
  %v273 = vld [vmem:[%s6 + $0xc] sm:$0xf]
  %v274 = vld [vmem:[%s6 + $0x10] sm:$0xf]
  %v275 = vld [vmem:[%s6 + $0x14] sm:$0xf]
  %v276 = vld [vmem:[%s6 + $0x18] sm:$0xf]
  %v277 = vld [vmem:[%s6 + $0x1c] sm:$0xf]
  %v278 = vld [vmem:[%s6 + $0x20] sm:$0xf]
  %v279 = vld [vmem:[%s6 + $0x24] sm:$0xf]
  %v280 = vld [vmem:[%s6 + $0x28] sm:$0xf]
  %v281 = vld [vmem:[%s6 + $0x2c] sm:$0xf]
  %v282 = vld [vmem:[%s6 + $0x30] sm:$0xf]
  %v283 = vld [vmem:[%s6 + $0x34] sm:$0xf]
  %v284 = vld [vmem:[%s6 + $0x38] sm:$0xf]
  %v285 = vld [vmem:[%s6 + $0x3c] sm:$0xf]
  %v286 = vld [vmem:[%s7] sm:$0x1]
  %v288 = vlaneseq
  %v289 = vshrl.u32 %v288, 7
  %v290 = vsub.s32 0, %v289
  %v291 = vrot.slane %v286, %v290
  %v309 = vunpack.c.l.b16 %v270
  %v310 = vunpack.c.l.b16 %v271
  %v311 = vunpack.c.l.b16 %v272
  %v312 = vunpack.c.l.b16 %v273
  %v313 = vunpack.c.l.b16 %v274
  %v314 = vunpack.c.l.b16 %v275
  %v315 = vunpack.c.l.b16 %v276
  %v316 = vunpack.c.l.b16 %v277
  %v317 = vunpack.c.l.b16 %v278
  %v318 = vunpack.c.l.b16 %v279
  %v319 = vunpack.c.l.b16 %v280
  %v320 = vunpack.c.l.b16 %v281
  %v321 = vunpack.c.l.b16 %v282
  %v322 = vunpack.c.l.b16 %v283
  %v323 = vunpack.c.l.b16 %v284
  %v324 = vunpack.c.l.b16 %v285
  %v325 = vpack.c.b16 %v310, %v309
  %v326 = vpack.c.b16 %v312, %v311
  %v327 = vpack.c.b16 %v314, %v313
  %v328 = vpack.c.b16 %v316, %v315
  %v329 = vpack.c.b16 %v318, %v317
  %v330 = vpack.c.b16 %v320, %v319
  %v331 = vpack.c.b16 %v322, %v321
  %v332 = vpack.c.b16 %v324, %v323
  %341 = vmatprep.subr.bf16.mxu0 0
  %342 = vmatpush1.bf16.msra.mxu0 %v325
  %343 = vmatprep.subr.bf16.mxu0 0
  %344 = vmatpush1.bf16.msra.mxu0 %v326
  %345 = vmatprep.subr.bf16.mxu0 0
  %346 = vmatpush1.bf16.msra.mxu0 %v327
  %347 = vmatprep.subr.bf16.mxu0 0
  %348 = vmatpush1.bf16.msra.mxu0 %v328
  %349 = vmatprep.subr.bf16.mxu0 0
  %350 = vmatpush1.bf16.msra.mxu0 %v329
  %351 = vmatprep.subr.bf16.mxu0 0
  %352 = vmatpush1.bf16.msra.mxu0 %v330
  %353 = vmatprep.subr.bf16.mxu0 0
  %354 = vmatpush1.bf16.msra.mxu0 %v331
  %355 = vmatprep.subr.bf16.mxu0 0
  %356 = vmatpush1.bf16.msra.mxu0 %v332
  %357 = vmatprep.subr.bf16.mxu0 0
  %358 = vmatpush1.bf16.msra.mxu0 0
  %359 = vmatprep.subr.bf16.mxu0 0
  %360 = vmatpush1.bf16.msra.mxu0 0
  %361 = vmatprep.subr.bf16.mxu0 0
  %362 = vmatpush1.bf16.msra.mxu0 0
  %363 = vmatprep.subr.bf16.mxu0 0
  %364 = vmatpush1.bf16.msra.mxu0 0
  %365 = vmatprep.subr.bf16.mxu0 0
  %366 = vmatpush1.bf16.msra.mxu0 0
  %367 = vmatprep.subr.bf16.mxu0 0
  %368 = vmatpush1.bf16.msra.mxu0 0
  %369 = vmatprep.subr.bf16.mxu0 0
  %370 = vmatpush1.bf16.msra.mxu0 0
  %371 = vmatprep.subr.bf16.mxu0 0
  %372 = vmatpush1.bf16.msra.mxu0 0
  %373 = vmatprep.mubr.bf16.mxu0 0
  %374 = vmatmul.mubr.bf16.gmra.mrb[0].mxu0 %v269
  %v375 = vpop.f32.mrb[0].mxu0
  %v376 = vadd.f32 %v291, %v375
  %v377 = vpop.f32.mrb[0].mxu0
  %v378 = vpop.f32.mrb[0].mxu0
  %v379 = vadd.f32 %v291, %v378
  %v380 = vpop.f32.mrb[0].mxu0
  %381 = vdwg.mxu0
  %382 = vst [vmem:[%s8] sm:$0xff] %v376
  %383 = vst [vmem:[%s8 + $0x8] sm:$0xff] %v379
  // Predicated region
  $region34: #{simple_model_rms_forward.1} parent=0 // pred_check
    _
  $region35: #{simple_model_rms_forward.1} parent=0 // pred_check_branch
    %385 = sbr.rel (0) target = $region37
  $region36: #{simple_model_rms_forward.1} parent=0 // pred_region
    _
  $region37: #{simple_model_rms_forward.1} parent=0 // pred_fallthru
    _
  // Predicated region
  $region38: #{simple_model_rms_forward.1} parent=0 // pred_check
    _
  $region39: #{simple_model_rms_forward.1} parent=0 // pred_check_branch
    %387 = sbr.rel (0) target = $region41
  $region40: #{simple_model_rms_forward.1} parent=0 // pred_region
    _
  $region41: #{simple_model_rms_forward.1} parent=0 // pred_fallthru
    _

</llo_original>
